<compile_context>
chip_gen: v5e
topology: v5e:2x2
jax: 0.10.0
libtpu: 0.0.40
codegen_flags: <defaults>
</compile_context>

<pallas_src>
import functools

import jax
import jax.numpy as jnp
from jax.experimental import pallas as pl
from jax.experimental.pallas import tpu as pltpu

EPS = 1e-6
_TARGET_BLOCK_BYTES = 8 * 1024 * 1024  # ~roofline-saturating input block size


@functools.lru_cache(maxsize=None)
def _vmem_budgets():
    """(pipeline_budget_bytes, scoped_vmem_limit_bytes) for the local TPU gen.

    v5e / v6e have 128 MiB physical VMEM -> generous budgets; v7x has 64 MiB
    per TensorCore -> conservative budgets (also the fallback when the
    hardware cannot be queried).
    """
    cap = None
    try:
        cap = getattr(pltpu.get_tpu_info(), "vmem_capacity_bytes", None)
    except Exception:
        cap = None
    if cap is not None and cap >= 100 * 1024 * 1024:   # v5e / v6e
        return 40 * 1024 * 1024, 96 * 1024 * 1024
    return 20 * 1024 * 1024, 40 * 1024 * 1024          # v7x / unknown


def _choose_tile_rows(rows, d, in_itemsize, out_itemsize, pipeline_budget):
    """Pick the row-tile size for the (rows, d) streaming LayerNorm.

    - dtype-aware sublane quantum (8 rows f32, 16 bf16, 32 int8);
    - byte-targeted: stop growing once the input block is ~8 MiB (per-step
      overhead of ~0.35 us is negligible at that size);
    - budget covers 2 double-buffered input blocks + 2 output blocks + ~2
      f32-sized in-kernel temporaries (f32 upcast copy and `centered`);
    - guarantees >= 2 grid steps when rows allow, so the "parallel" axis can
      shard across both TensorCores on v7x.
    """
    quantum = max(8, 32 // max(in_itemsize, 1))
    bytes_per_row = d * (2 * in_itemsize + 2 * out_itemsize + 2 * 4)
    tile = pipeline_budget // max(bytes_per_row, 1)
    tile = min(tile, _TARGET_BLOCK_BYTES // max(d * in_itemsize, 1))
    tile = max(quantum, (tile // quantum) * quantum)
    if tile >= rows:
        if rows >= 2 * quantum:
            # Force >= 2 grid steps (round half up to the sublane quantum;
            # this is always strictly less than rows here).
            half = -(-rows // 2)
            tile = ((half + quantum - 1) // quantum) * quantum
        else:
            tile = rows
    return max(1, min(tile, rows))


def _layernorm_kernel(alpha_ref, bias_ref, x_ref, o_ref):
    # x_ref: (TM, D) block in VMEM; alpha/bias: (1,) f32 scalars in SMEM.
    # NOTE: a partial last block computes on uninitialized VMEM rows; those
    # rows are never stored (masked writeback), so garbage (even NaN/Inf) in
    # them is benign.
    x = x_ref[...].astype(jnp.float32)
    d = x.shape[-1]
    mean = jnp.mean(x, axis=-1, keepdims=True)
    centered = x - mean
    # torch.std default is the unbiased estimator (ddof=1); eps is added to
    # std (NOT variance) to match the PyTorch reference exactly.  d must be
    # >= 2, otherwise torch itself produces inf/nan here.
    var = jnp.sum(centered * centered, axis=-1, keepdims=True) * (1.0 / (d - 1))
    std = jnp.sqrt(var)
    # Exact reciprocal (approx=True's ~1e-4 rel error would change results);
    # alpha is folded into the per-row scale so the elementwise epilogue is a
    # single multiply-add per element.
    scale = alpha_ref[0] * pl.reciprocal(std + EPS, approx=False)
    o_ref[...] = (centered * scale + bias_ref[0]).astype(o_ref.dtype)


def pallas_layernorm(x, alpha, bias):
    """x: (..., D). alpha, bias: shape-(1,) float32 parameters."""
    orig_shape = x.shape
    D = orig_shape[-1]
    rows = 1
    for s in orig_shape[:-1]:
        rows *= s
    x2 = x.reshape(rows, D)

    pipeline_budget, vmem_limit = _vmem_budgets()
    itemsize = x2.dtype.itemsize
    tile_rows = _choose_tile_rows(rows, D, itemsize, itemsize, pipeline_budget)
    grid = (pl.cdiv(rows, tile_rows),)

    # Advisory cost model: HBM-bound streaming op (one read + one write of x).
    cost = pl.CostEstimate(
        flops=8 * rows * D,
        transcendentals=2 * rows,
        bytes_accessed=2 * rows * D * itemsize,
    )

    out = pl.pallas_call(
        _layernorm_kernel,
        out_shape=jax.ShapeDtypeStruct((rows, D), x.dtype),
        grid_spec=pl.GridSpec(
            grid=grid,
            in_specs=[
                pl.BlockSpec(memory_space=pltpu.SMEM),   # alpha (scalar)
                pl.BlockSpec(memory_space=pltpu.SMEM),   # bias  (scalar)
                pl.BlockSpec((tile_rows, D), lambda i: (i, 0)),
            ],
            out_specs=pl.BlockSpec((tile_rows, D), lambda i: (i, 0)),
        ),
        compiler_params=pltpu.CompilerParams(
            dimension_semantics=("parallel",),
            vmem_limit_bytes=vmem_limit,
        ),
        cost_estimate=cost,
    )(alpha, bias, x2)

    return out.reshape(orig_shape)


class Encoder:
    """JAX/Pallas port of the PyTorch Encoder module."""

    def __init__(self, layers=()):
        # layers: sequence of callables f(x, mask) -> x (plain JAX glue).
        self.layers = list(layers)
        # nn.Parameter(torch.ones(1)) / nn.Parameter(torch.zeros(1))
        self.alpha = jnp.ones((1,), dtype=jnp.float32)
        self.bias = jnp.zeros((1,), dtype=jnp.float32)

    def __call__(self, x, mask):
        for layer in self.layers:
            x = layer(x, mask)
        return pallas_layernorm(x, self.alpha, self.bias)


def _reference_layernorm(x, alpha, bias, eps=EPS):
    x32 = x.astype(jnp.float32)
    mean = jnp.mean(x32, axis=-1, keepdims=True)
    var = jnp.sum((x32 - mean) ** 2, axis=-1, keepdims=True) / (x.shape[-1] - 1)
    std = jnp.sqrt(var)
    return (alpha * (x32 - mean) / (std + eps) + bias).astype(x.dtype)


if __name__ == "__main__":
    key = jax.random.PRNGKey(0)
    k1, k2, k3 = jax.random.split(key, 3)
    enc = Encoder(layers=())  # no concrete layers specified in the reference

    # Case 1: the module-sized smoke test (batch=2, seq=8, d_model=32).
    B, S, D = 2, 8, 32
    x1 = jax.random.normal(k1, (B, S, D), dtype=jnp.float32)
    mask = jnp.ones((B, 1, 1, S), dtype=jnp.float32)  # unused by identity layers
    out1 = jax.block_until_ready(enc(x1, mask))
    ref1 = _reference_layernorm(x1, enc.alpha, enc.bias)
    assert out1.shape == x1.shape and out1.dtype == x1.dtype
    assert jnp.allclose(out1, ref1, atol=1e-5, rtol=1e-5)

    # Case 2: lane-dense d_model (multiple of 128) - the common transformer case.
    x2 = jax.random.normal(k2, (2, 8, 128), dtype=jnp.float32)
    out2 = jax.block_until_ready(enc(x2, None))
    ref2 = _reference_layernorm(x2, enc.alpha, enc.bias)
    assert jnp.allclose(out2, ref2, atol=1e-5, rtol=1e-5)

    # Case 3: odd sizes (rows not a multiple of the tile, D=48) -> partial
    # last block + masked stores.
    x3 = jax.random.normal(k3, (2, 7, 48), dtype=jnp.float32)
    out3 = jax.block_until_ready(enc(x3, None))
    ref3 = _reference_layernorm(x3, enc.alpha, enc.bias)
    assert jnp.allclose(out3, ref3, atol=1e-5, rtol=1e-5)

    print("KERNEL_OK")
</pallas_src>

<mosaic_0001>
module attributes {stable_mosaic.version = 11 : i64} {
  func.func @_layernorm_kernel(%arg0: i32, %arg1: memref<1xf32, #tpu.memory_space<smem>>, %arg2: memref<1xf32, #tpu.memory_space<smem>>, %arg3: memref<8x32xf32, #tpu.memory_space<vmem>>, %arg4: memref<8x32xf32, #tpu.memory_space<vmem>>) attributes {dimension_semantics = [#tpu.dimension_semantics<parallel>], iteration_bounds = array<i64: 2>, scalar_prefetch = 0 : i64, scratch_operands = 0 : i64, tpu.core_type = #tpu.core_type<tc>, window_params = [{transform_indices = @transform_0, window_bounds = array<i64: 1>}, {transform_indices = @transform_1, window_bounds = array<i64: 1>}, {transform_indices = @transform_2, window_bounds = array<i64: 8, 32>}, {transform_indices = @transform_3, window_bounds = array<i64: 8, 32>}]} {
    %c0 = arith.constant 0 : index
    %c0_0 = arith.constant 0 : index
    %0 = vector.load %arg3[%c0, %c0_0] : memref<8x32xf32, #tpu.memory_space<vmem>>, vector<8x32xf32>
    %cst = arith.constant dense<0.000000e+00> : vector<8xf32>
    %1 = vector.multi_reduction <add>, %0, %cst [1] : vector<8x32xf32> to vector<8xf32>
    %2 = vector.shape_cast %1 : vector<8xf32> to vector<8x1xf32>
    %cst_1 = arith.constant 3.200000e+01 : f32
    %3 = vector.broadcast %cst_1 : f32 to vector<8x1xf32>
    %4 = arith.divf %2, %3 : vector<8x1xf32>
    %5 = vector.broadcast %4 : vector<8x1xf32> to vector<8x32xf32>
    %6 = arith.subf %0, %5 : vector<8x32xf32>
    %7 = arith.mulf %6, %6 : vector<8x32xf32>
    %cst_2 = arith.constant dense<0.000000e+00> : vector<8xf32>
    %8 = vector.multi_reduction <add>, %7, %cst_2 [1] : vector<8x32xf32> to vector<8xf32>
    %9 = vector.shape_cast %8 : vector<8xf32> to vector<8x1xf32>
    %cst_3 = arith.constant 0.0322580636 : f32
    %10 = vector.broadcast %cst_3 : f32 to vector<8x1xf32>
    %11 = arith.mulf %9, %10 : vector<8x1xf32>
    %12 = math.sqrt %11 : vector<8x1xf32>
    %c0_4 = arith.constant 0 : index
    %13 = memref.load %arg1[%c0_4] : memref<1xf32, #tpu.memory_space<smem>>
    %cst_5 = arith.constant 9.99999997E-7 : f32
    %14 = vector.broadcast %cst_5 : f32 to vector<8x1xf32>
    %15 = arith.addf %12, %14 : vector<8x1xf32>
    %16 = tpu.reciprocal %15 : vector<8x1xf32> -> vector<8x1xf32>
    %17 = vector.broadcast %13 : f32 to vector<8x1xf32>
    %18 = arith.mulf %17, %16 : vector<8x1xf32>
    %19 = vector.broadcast %18 : vector<8x1xf32> to vector<8x32xf32>
    %20 = arith.mulf %6, %19 : vector<8x32xf32>
    %c0_6 = arith.constant 0 : index
    %21 = memref.load %arg2[%c0_6] : memref<1xf32, #tpu.memory_space<smem>>
    %22 = vector.broadcast %21 : f32 to vector<8x32xf32>
    %23 = arith.addf %20, %22 : vector<8x32xf32>
    %c0_7 = arith.constant 0 : index
    %c0_8 = arith.constant 0 : index
    %24 = vector.load %arg4[%c0_7, %c0_8] : memref<8x32xf32, #tpu.memory_space<vmem>>, vector<8x32xf32>
    tpu.vector_store %arg4[%c0_7, %c0_8], %23 {strides = array<i32>} : memref<8x32xf32, #tpu.memory_space<vmem>>, vector<8x32xf32>,
    return
  }
  func.func @transform_0(%arg0: i32) -> i32 {
    %c0_i32 = arith.constant 0 : i32
    %c0_i32_0 = arith.constant 0 : i32
    return %c0_i32 : i32
  }
  func.func @transform_1(%arg0: i32) -> i32 {
    %c0_i32 = arith.constant 0 : i32
    %c0_i32_0 = arith.constant 0 : i32
    return %c0_i32 : i32
  }
  func.func @transform_2(%arg0: i32) -> (i32, i32) {
    %c0_i32 = arith.constant 0 : i32
    %c0_i32_0 = arith.constant 0 : i32
    return %arg0, %c0_i32 : i32, i32
  }
  func.func @transform_3(%arg0: i32) -> (i32, i32) {
    %c0_i32 = arith.constant 0 : i32
    %c0_i32_0 = arith.constant 0 : i32
    return %arg0, %c0_i32 : i32, i32
  }
}

</mosaic_0001>

<llo_original>
// kernel: tpu_custom_call.1
$region0: #{tpu_custom_call.1}
  #allocation0 [shape = 'u32[]', space=smem, size = 0x4, offset = 0x4, fixed_abs, tag = 'smem constant byte address 0x4 - core index']
  #allocation1 [shape = 'u32[72,128]{1,0:T(1,128)}', space=vmem, size = 0x9000, scoped, tag = 'internal scratch']
  #allocation2 [shape = 'f32[1]{0:T(128)S(6)}', space=smem, size = 0x200, scoped, tag = 'scoped memory for tpu_custom_call.1']
  #allocation3 [shape = 'f32[1]{0:T(128)S(6)}', space=smem, size = 0x200, scoped, tag = 'scoped memory for tpu_custom_call.1']
  %s0 = inlined_call_operand.<no memory space> [shape: f32[1], index: 0, kind: input, shape index: {}]
  %s1 = inlined_call_operand.<no memory space> [shape: f32[1], index: 1, kind: input, shape index: {}]
  %s2 = inlined_call_operand.hbm [shape: f32[16,32], index: 2, kind: input, shape index: {}]
  %s3 = inlined_call_operand.hbm [shape: f32[16,32], index: 3, kind: output, shape index: {}]
  %s4 = sld [smem:[#allocation0]]
  $region49: #{tpu_custom_call.1} parent=0
    _
  %s6 = ssub.s32 1, %s4
  %s7 = scalar_select 0, %s6, %s4
  %8 = sst [smem:[#allocation2]] %s0
  %9 = sst [smem:[#allocation3]] %s1
  $region1: #{tpu_custom_call.1} parent=0
    #allocation4 [shape = 'u8[8192]{0}', space=vmem, size = 0x2000, scoped, tag = 'input window, operand 2']
    #allocation5 [shape = 's32[2]{0}', space=sflag, size = 0x8, scoped, tag = 'scoped memory for tpu_custom_call.1']
    #allocation6 [shape = 's32[2]{0}', space=sflag, size = 0x8, scoped, tag = 'scoped memory for tpu_custom_call.1']
    #allocation7 [shape = 'u8[8192]{0}', space=vmem, size = 0x2000, scoped, tag = 'output window, operand 0']
    %10 = vsyncpa [#allocation5], 0
    %s11 = scalar_lea.sflag [#allocation5], 1
    %12 = vsyncpa %s11, 0
    %13 = vsyncpa [#allocation6], 0
    %s14 = scalar_lea.sflag [#allocation6], 1
    %15 = vsyncpa %s14, 0
    loop: start=0, step=1, limit=4
    $region2: #{tpu_custom_call.1} parent=1 // loop_pre_header
      _
    $region3: #{tpu_custom_call.1} parent=1 // loop_header
      %s17 = sphi 0, %s21
      %p18 = scmp.ge.s32.totalorder %s17, 4
      %s25 = sphi 0, %s25
      %s27 = sphi 0, %s25
      %s28 = sphi 0, %s27
      %s42 = sphi 0, %s28
      %s46 = sphi 0, %s46
      %s48 = sphi 0, %s46
      %s49 = sphi 0, %s48
      %s63 = sphi 0, %s49
      %s69 = sphi 0, %s71
      %s72 = sphi 0, %s69
      %s73 = sphi 0, %s72
      %s89 = sphi 0, %s73
      %s95 = sphi 0, %s97
      %s98 = sphi 0, %s95
      %s99 = sphi 0, %s98
      %s115 = sphi 0, %s99
    $region4: #{tpu_custom_call.1} parent=1 // loop_header_branch
      %20 = sbr.rel (%p18) target = $region8
    $region5: #{tpu_custom_call.1} parent=1 // loop_body
      %s22 = ssub.s32 %s17, 1
      %s23 = ssub.s32 %s17, 2
      %s24 = sadd.s32 %s17, 1
      %s26 = sadd.s32 %s25, 1
      %p29 = scmp.eq.s32.totalorder %s17, 1
      %p30 = scmp.ne.s32.totalorder %s25, %s27
      %p31 = scmp.eq.s32.totalorder %s17, 0
      %p32 = por %p30, %p31
      %p33 = scmp.ne.s32.totalorder %s25, %s27
      %p34 = scmp.eq.s32.totalorder %s22, 1
      %p35 = por %p33, %p34
      %p36 = scmp.ne.s32.totalorder %s27, %s28
      %p37 = scmp.eq.s32.totalorder %s22, 0
      %p38 = por %p36, %p37
      %p39 = scmp.ne.s32.totalorder %s27, %s28
      %p40 = scmp.eq.s32.totalorder %s23, 1
      %p41 = por %p39, %p40
      %p43 = scmp.ne.s32.totalorder %s28, %s42
      %p44 = scmp.eq.s32.totalorder %s23, 0
      %p45 = por %p43, %p44
      %s47 = sadd.s32 %s46, 1
      %p50 = scmp.eq.s32.totalorder %s17, 1
      %p51 = scmp.ne.s32.totalorder %s46, %s48
      %p52 = scmp.eq.s32.totalorder %s17, 0
      %p53 = por %p51, %p52
      %p54 = scmp.ne.s32.totalorder %s46, %s48
      %p55 = scmp.eq.s32.totalorder %s22, 1
      %p56 = por %p54, %p55
      %p57 = scmp.ne.s32.totalorder %s48, %s49
      %p58 = scmp.eq.s32.totalorder %s22, 0
      %p59 = por %p57, %p58
      %p60 = scmp.ne.s32.totalorder %s48, %s49
      %p61 = scmp.eq.s32.totalorder %s23, 1
      %p62 = por %p60, %p61
      %p64 = scmp.ne.s32.totalorder %s49, %s63
      %p65 = scmp.eq.s32.totalorder %s23, 0
      %p66 = por %p64, %p65
      %s67 = ssub.s32 %s17, %s24
      %p68 = scmp.eq.s32.totalorder %s67, 0
      %s70 = sadd.s32 %s69, 1
      %s71 = scalar_select %p68, %s69, %s70
      %p74 = pneg %p68
      %p75 = scmp.eq.s32.totalorder %s17, 1
      %p76 = por %p74, %p75
      %p77 = scmp.ne.s32.totalorder %s69, %s72
      %p78 = scmp.eq.s32.totalorder %s17, 0
      %p79 = por %p77, %p78
      %p80 = scmp.ne.s32.totalorder %s69, %s72
      %p81 = scmp.eq.s32.totalorder %s22, 1
      %p82 = por %p80, %p81
      %p83 = scmp.ne.s32.totalorder %s72, %s73
      %p84 = scmp.eq.s32.totalorder %s22, 0
      %p85 = por %p83, %p84
      %p86 = scmp.ne.s32.totalorder %s72, %s73
      %p87 = scmp.eq.s32.totalorder %s23, 1
      %p88 = por %p86, %p87
      %p90 = scmp.ne.s32.totalorder %s73, %s89
      %p91 = scmp.eq.s32.totalorder %s23, 0
      %p92 = por %p90, %p91
      %s93 = ssub.s32 %s17, %s24
      %p94 = scmp.eq.s32.totalorder %s93, 0
      %s96 = sadd.s32 %s95, 1
      %s97 = scalar_select %p94, %s95, %s96
      %p100 = pneg %p94
      %p101 = scmp.eq.s32.totalorder %s17, 1
      %p102 = por %p100, %p101
      %p103 = scmp.ne.s32.totalorder %s95, %s98
      %p104 = scmp.eq.s32.totalorder %s17, 0
      %p105 = por %p103, %p104
      %p106 = scmp.ne.s32.totalorder %s95, %s98
      %p107 = scmp.eq.s32.totalorder %s22, 1
      %p108 = por %p106, %p107
      %p109 = scmp.ne.s32.totalorder %s98, %s99
      %p110 = scmp.eq.s32.totalorder %s22, 0
      %p111 = por %p109, %p110
      %p112 = scmp.ne.s32.totalorder %s98, %s99
      %p113 = scmp.eq.s32.totalorder %s23, 1
      %p114 = por %p112, %p113
      %p116 = scmp.ne.s32.totalorder %s99, %s115
      %p117 = scmp.eq.s32.totalorder %s23, 0
      %p118 = por %p116, %p117
      %p119 = scmp.le.s32.totalorder 1, %s17
      %p120 = scmp.lt.s32.totalorder %s17, 3
      %p121 = pnand %p119, %p120
      %p122 = pneg %p121
      // Predicated region
      $region9: #{tpu_custom_call.1} parent=5 // pred_check
        _
      $region10: #{tpu_custom_call.1} parent=5 // pred_check_branch
        %124 = sbr.rel (%p121) target = $region12
      $region11: #{tpu_custom_call.1} parent=5 // pred_region
        %s125 = ssub.s32 %s17, 1
        // Predicated region
        $region13: #{tpu_custom_call.1} parent=11 // pred_check
          %p126 = pneg %p38
        $region14: #{tpu_custom_call.1} parent=11 // pred_check_branch
          %128 = sbr.rel (%p126) target = $region16
        $region15: #{tpu_custom_call.1} parent=11 // pred_region
          _
        $region16: #{tpu_custom_call.1} parent=11 // pred_fallthru
          _
        // Predicated region
        $region17: #{tpu_custom_call.1} parent=11 // pred_check
          %p129 = pneg %p59
        $region18: #{tpu_custom_call.1} parent=11 // pred_check_branch
          %131 = sbr.rel (%p129) target = $region20
        $region19: #{tpu_custom_call.1} parent=11 // pred_region
          _
        $region20: #{tpu_custom_call.1} parent=11 // pred_fallthru
          _
      $region12: #{tpu_custom_call.1} parent=5 // pred_fallthru
        _
      %p132 = scmp.lt.s32.totalorder %s17, 2
      // Predicated region
      $region21: #{tpu_custom_call.1} parent=5 // pred_check
        %p133 = pneg %p132
      $region22: #{tpu_custom_call.1} parent=5 // pred_check_branch
        %135 = sbr.rel (%p133) target = $region24
      $region23: #{tpu_custom_call.1} parent=5 // pred_region
        // Predicated region
        $region25: #{tpu_custom_call.1} parent=23 // pred_check
          %p136 = pneg %p79
        $region26: #{tpu_custom_call.1} parent=23 // pred_check_branch
          %138 = sbr.rel (%p136) target = $region28
        $region27: #{tpu_custom_call.1} parent=23 // pred_region
          %s139 = sand.u32 %s69, 1
          %s140 = scalar_lea.sflag [#allocation5], %s139
          %s141 = sand.u32 %s69, 1
          %s142 = smul.addr %s141, 8
          %s143 = scalar_lea.vmem [#allocation4], %s142
          %145 = vsyncadd %s140, 0
          %s146 = smul.addr %s17, 8
          %s147 = scalar_lea.hbm %s2, %s146
          %s149 = sshll.u32 %s147, 4
          %s150 = int_to_ptr.hbm [resolvable:$true] %s149
          %s151 = sshll.u32 %s143, 4
          %s152 = int_to_ptr.vmem [resolvable:$true] %s151
          %154 = dma.hbm_to_vmem [thread:$0]  %s150, 128, %s152, %s140
        $region28: #{tpu_custom_call.1} parent=23 // pred_fallthru
          _
      $region24: #{tpu_custom_call.1} parent=5 // pred_fallthru
        _
      %p155 = scmp.le.s32.totalorder 1, %s17
      %p156 = scmp.lt.s32.totalorder %s17, 3
      %p157 = pnand %p155, %p156
      %p158 = pneg %p157
      // Predicated region
      $region29: #{tpu_custom_call.1} parent=5 // pred_check
        _
      $region30: #{tpu_custom_call.1} parent=5 // pred_check_branch
        %160 = sbr.rel (%p157) target = $region32
      $region31: #{tpu_custom_call.1} parent=5 // pred_region
        %s161 = ssub.s32 %s17, 1
        %s162 = sand.u32 %s72, 1
        %s163 = scalar_lea.sflag [#allocation5], %s162
        %s164 = sand.u32 %s72, 1
        %s165 = smul.addr %s164, 8
        %s166 = scalar_lea.vmem [#allocation4], %s165
        // Predicated region
        $region33: #{tpu_custom_call.1} parent=31 // pred_check
          %p167 = pneg %p85
        $region34: #{tpu_custom_call.1} parent=31 // pred_check_branch
          %169 = sbr.rel (%p167) target = $region36
        $region35: #{tpu_custom_call.1} parent=31 // pred_region
          %171 = dma.done %s163, 128
        $region36: #{tpu_custom_call.1} parent=31 // pred_fallthru
          _
        %p172 = pneg %p38
        %p173 = pneg %p35
        %p174 = pneg %p59
        %p175 = pneg %p56
        %s176 = sand.u32 %s72, 1
        %s177 = scalar_lea.sflag [#allocation5], %s176
        %s178 = sand.u32 %s72, 1
        %s179 = smul.addr %s178, 8
        %s180 = scalar_lea.vmem [#allocation4], %s179
        %p181 = pneg %p85
        %p182 = pneg %p82
        %p183 = pneg %p111
        %p184 = pneg %p108
        %s185 = sand.u32 %s98, 1
        %s186 = scalar_lea.sflag [#allocation6], %s185
        %s187 = sand.u32 %s98, 1
        %s188 = smul.addr %s187, 8
        %s189 = scalar_lea.vmem [#allocation7], %s188
        %v190 = vld [vmem:[%s166] sm:$0xff]
        %vm191 = vcmask 261120
        %v192 = vsel %vm191, %v190, 0.0
        %193 = vadd.xlane.f32.xlu0 %v192
        %v194 = vpop.xlane.xlu0 %193
        %v195 = vrcp.pop 32.0
        %v196 = vmul.f32 32.0, %v195
        %v197 = vsub.f32 1.0, %v196
        %v198 = vmul.f32 %v195, %v197
        %v199 = vadd.f32 %v195, %v198
        %vm200 = vweird.f32 %v195
        %v201 = vsel %vm200, %v195, %v199
        %v202 = vmul.f32 %v194, %v201
        %v203 = vsub.f32 %v190, %v202
        %v204 = vmul.f32 %v203, %v203
        %v205 = vsel %vm191, %v204, 0.0
        %206 = vadd.xlane.f32.xlu0 %v205
        %v207 = vpop.xlane.xlu0 %206
        %v208 = vmul.f32 %v207, 0.032258064
        %v209 = vrsqrt.pop %v208
        %v210 = vmul.f32 %v209, %v208
        %v211 = vmul.f32 %v210, %v209
        %v212 = vmul.f32 0.5, %v211
        %v213 = vsub.f32 1.5, %v212
        %v214 = vmul.f32 %v209, %v213
        %v215 = vmul.f32 %v208, %v214
        %vm216 = vcmp.eq.f32.partialorder %v208, inf
        %v217 = vsel %vm216, %v208, %v215
        %vm218 = vcmp.eq.f32.partialorder %v208, 0.0
        %v219 = vand.u32 %v208, 2147483648
        %v220 = vsel %vm218, %v219, %v217
        %s221 = sld [smem:[#allocation2]]
        %v222 = vadd.f32 %v220, 1e-06
        %v223 = vrcp.pop %v222
        %v224 = vmul.f32 %v222, %v223
        %v225 = vsub.f32 1.0, %v224
        %v226 = vmul.f32 %v223, %v225
        %v227 = vadd.f32 %v223, %v226
        %vm228 = vweird.f32 %v222
        %vm229 = vweird.f32 %v223
        %vm230 = vmor %vm228, %vm229
        %v231 = vsel %vm230, %v223, %v227
        %v232 = vand.u32 2147483647, %v222
        %vm233 = vcmp.eq.f32.partialorder %v232, 8.507059e+37
        %v234 = vand.u32 %v222, 2147483648
        %v235 = vor.u32 1.1754944e-38, %v234
        %v236 = vsel %vm233, %v235, %v231
        %v237 = vstv %s221
        %v238 = vmul.f32 %v237, %v236
        %v239 = vmul.f32 %v203, %v238
        %s240 = sld [smem:[#allocation3]]
        %v241 = vstv %s240
        %v242 = vadd.f32 %v239, %v241
        %243 = vst.msk [vmem:[%s189] sm:$0xff] %vm191, %v242
        %s244 = sand.u32 %s98, 1
        %s245 = scalar_lea.sflag [#allocation6], %s244
        %s246 = sand.u32 %s98, 1
        %s247 = smul.addr %s246, 8
        %s248 = scalar_lea.vmem [#allocation7], %s247
        // Predicated region
        $region37: #{tpu_custom_call.1} parent=31 // pred_check
          %p249 = pneg %p108
        $region38: #{tpu_custom_call.1} parent=31 // pred_check_branch
          %251 = sbr.rel (%p249) target = $region40
        $region39: #{tpu_custom_call.1} parent=31 // pred_region
          %253 = vsyncadd %s245, 0
          %s254 = smul.addr %s22, 8
          %s255 = scalar_lea.hbm %s3, %s254
          %s257 = sshll.u32 %s248, 4
          %s258 = int_to_ptr.vmem [resolvable:$true] %s257
          %s259 = sshll.u32 %s255, 4
          %s260 = int_to_ptr.hbm [resolvable:$true] %s259
          %262 = dma.vmem_to_hbm [thread:$0]  %s258, 128, %s260, %s245
        $region40: #{tpu_custom_call.1} parent=31 // pred_fallthru
          _
      $region32: #{tpu_custom_call.1} parent=5 // pred_fallthru
        _
      %p263 = scmp.le.s32.totalorder 2, %s17
      // Predicated region
      $region41: #{tpu_custom_call.1} parent=5 // pred_check
        %p264 = pneg %p263
      $region42: #{tpu_custom_call.1} parent=5 // pred_check_branch
        %266 = sbr.rel (%p264) target = $region44
      $region43: #{tpu_custom_call.1} parent=5 // pred_region
        %s267 = ssub.s32 %s17, 2
        // Predicated region
        $region45: #{tpu_custom_call.1} parent=43 // pred_check
          %p268 = pneg %p114
        $region46: #{tpu_custom_call.1} parent=43 // pred_check_branch
          %270 = sbr.rel (%p268) target = $region48
        $region47: #{tpu_custom_call.1} parent=43 // pred_region
          %s271 = sand.u32 %s99, 1
          %s272 = scalar_lea.sflag [#allocation6], %s271
          %s273 = sand.u32 %s99, 1
          %s274 = smul.addr %s273, 8
          %s275 = scalar_lea.vmem [#allocation7], %s274
          %277 = dma.done %s272, 128
        $region48: #{tpu_custom_call.1} parent=43 // pred_fallthru
          _
      $region44: #{tpu_custom_call.1} parent=5 // pred_fallthru
        _
    $region6: #{tpu_custom_call.1} parent=1 // loop_footer
      %s21 = sadd.s32 1, %s17
    $region7: #{tpu_custom_call.1} parent=1 // loop_footer_branch
      %16 = sbr.rel target = $region3
    $region8: #{tpu_custom_call.1} parent=1 // loop_exit
      _
    %278 = vsyncpa [#allocation5], 1
    %s279 = scalar_lea.sflag [#allocation5], 1
    %280 = vsyncpa %s279, 1
    %281 = vsyncpa [#allocation6], 1
    %s282 = scalar_lea.sflag [#allocation6], 1
    %283 = vsyncpa %s282, 1

</llo_original>
